<compile_context>
chip_gen: v5e
topology: v5e:2x2
jax: 0.10.0
libtpu: 0.0.40
codegen_flags: <defaults>
</compile_context>

<pallas_src>
import jax
import jax.numpy as jnp
from jax.experimental import pallas as pl
from jax.experimental.pallas import tpu as pltpu

LANE = 128
TILE = 128          # row / contraction tile (fits every generation's VMEM easily)


def round_up(n, m):
    return ((n + m - 1) // m) * m


# ----------------------------- Pallas kernels ------------------------------ #
def gcn_layer1_kernel(adj_ref, x_ref, w1_ref, b1_ref, h_ref, acc_ref):
    """h = relu(A_hat @ (x @ W1) + b1), tiled over (row tile i, k tile)."""
    @pl.when(pl.program_id(1) == 0)
    def _():
        acc_ref[...] = jnp.zeros_like(acc_ref)

    # Feature transform for this k-tile (recomputed per row tile; overhead is
    # O(IN/TILE) of the dominant adj matmul -- negligible for IN << TILE).
    xw = jnp.dot(x_ref[...], w1_ref[...],
                 preferred_element_type=jnp.float32)              # [TK, H] f32
    acc_ref[...] += jnp.dot(adj_ref[...], xw.astype(jnp.bfloat16),
                            preferred_element_type=jnp.float32)   # [TM, H] f32

    @pl.when(pl.program_id(1) == pl.num_programs(1) - 1)
    def _():
        h = jnp.maximum(acc_ref[...] + b1_ref[...], 0.0)          # f32 VPU
        h_ref[...] = h.astype(h_ref.dtype)                        # store bf16


def gcn_heads_kernel(adj_ref, h_ref, wh_ref, bh_ref, out_ref, acc_ref):
    """out = (A_hat @ h) @ [Wmu|Wlogstd]_pad + [bmu|blogstd]_pad."""
    @pl.when(pl.program_id(1) == 0)
    def _():
        acc_ref[...] = jnp.zeros_like(acc_ref)

    # N^2-scaling aggregation carries the narrow width H.
    acc_ref[...] += jnp.dot(adj_ref[...], h_ref[...],
                            preferred_element_type=jnp.float32)   # [TM, H] f32

    @pl.when(pl.program_id(1) == pl.num_programs(1) - 1)
    def _():
        out_ref[...] = (jnp.dot(acc_ref[...].astype(jnp.bfloat16), wh_ref[...],
                                preferred_element_type=jnp.float32)
                        + bh_ref[...])                            # [TM, 2*O_pad]


# ------------------------------- forward ----------------------------------- #
def encoder_forward(adj_pad_bf16, x_pad_bf16, prep, num_nodes,
                    *, tile_m=TILE, tile_k=TILE):
    """adj_pad_bf16: [Np, Np] bf16 normalized adjacency (padded, built once).
    x_pad_bf16: [Np, IN] bf16 node features (padded, cast once).
    prep: one-time prepared kernel params (fused/padded head weights, bf16)."""
    n_pad = adj_pad_bf16.shape[0]
    in_ch = x_pad_bf16.shape[1]
    hid = prep["w1"].shape[1]
    heads_pad = prep["wh"].shape[1]
    out_ch = prep["out_ch"]
    grid = (n_pad // tile_m, n_pad // tile_k)

    sem = pltpu.CompilerParams(dimension_semantics=("parallel", "arbitrary"))

    # ---- layer 1: h = relu(A_hat @ (x @ W1) + b1), stored bf16 ----
    h = pl.pallas_call(
        gcn_layer1_kernel,
        out_shape=jax.ShapeDtypeStruct((n_pad, hid), jnp.bfloat16),
        grid_spec=pltpu.PrefetchScalarGridSpec(
            num_scalar_prefetch=0,
            grid=grid,
            in_specs=[
                pl.BlockSpec((tile_m, tile_k), lambda i, k: (i, k)),   # adj
                pl.BlockSpec((tile_k, in_ch), lambda i, k: (k, 0)),    # x
                pl.BlockSpec(prep["w1"].shape, lambda i, k: (0, 0)),   # W1
                pl.BlockSpec(prep["b1"].shape, lambda i, k: (0, 0)),   # b1
            ],
            out_specs=pl.BlockSpec((tile_m, hid), lambda i, k: (i, 0)),
            scratch_shapes=[pltpu.VMEM((tile_m, hid), jnp.float32)],
        ),
        compiler_params=sem,
    )(adj_pad_bf16, x_pad_bf16, prep["w1"], prep["b1"])

    # ---- fused (mu || logstd) head: out = (A_hat @ h) @ Wh + bh ----
    out = pl.pallas_call(
        gcn_heads_kernel,
        out_shape=jax.ShapeDtypeStruct((n_pad, heads_pad), jnp.float32),
        grid_spec=pltpu.PrefetchScalarGridSpec(
            num_scalar_prefetch=0,
            grid=grid,
            in_specs=[
                pl.BlockSpec((tile_m, tile_k), lambda i, k: (i, k)),   # adj
                pl.BlockSpec((tile_k, hid), lambda i, k: (k, 0)),      # h
                pl.BlockSpec(prep["wh"].shape, lambda i, k: (0, 0)),   # Wh
                pl.BlockSpec(prep["bh"].shape, lambda i, k: (0, 0)),   # bh
            ],
            out_specs=pl.BlockSpec((tile_m, heads_pad), lambda i, k: (i, 0)),
            scratch_shapes=[pltpu.VMEM((tile_m, hid), jnp.float32)],
        ),
        compiler_params=sem,
    )(adj_pad_bf16, h, prep["wh"], prep["bh"])

    mu = out[:num_nodes, :out_ch]
    logstd = out[:num_nodes, out_ch:2 * out_ch]
    return mu, logstd


# ------------------------------ JAX glue ----------------------------------- #
def build_norm_adj(edge_index, num_nodes, num_nodes_pad):
    """A_hat = D^{-1/2}(A + I_remaining)D^{-1/2}; A[dst, src] += 1 per edge.
    Built at padded size (pad rows/cols are all-zero, so they never leak into
    real outputs). Returns (f32 for reference, bf16 for the kernel) once per
    graph -- no per-forward-call cast."""
    src, dst = edge_index[0], edge_index[1]
    A = jnp.zeros((num_nodes_pad, num_nodes_pad), jnp.float32)
    A = A.at[dst, src].add(1.0)
    # add_remaining_self_loops (real nodes only; no double-count).
    idx = jnp.arange(num_nodes_pad)
    diag = jnp.diagonal(A)
    A = A + jnp.diag(jnp.where((idx < num_nodes) & (diag == 0), 1.0, 0.0))
    deg = A.sum(axis=1)
    dinv = jnp.where(deg > 0, jax.lax.rsqrt(deg), 0.0)
    adj = dinv[:, None] * A * dinv[None, :]
    return adj, adj.astype(jnp.bfloat16)


def glorot(key, fan_in, fan_out):
    limit = jnp.sqrt(6.0 / (fan_in + fan_out))
    return jax.random.uniform(key, (fan_in, fan_out), jnp.float32, -limit, limit)


def init_params(key, in_ch, hid_ch, out_ch):
    k1, k2, k3 = jax.random.split(key, 3)
    return dict(
        w1=glorot(k1, in_ch, hid_ch), b1=jnp.zeros((1, hid_ch), jnp.float32),
        wmu=glorot(k2, hid_ch, out_ch), bmu=jnp.zeros((1, out_ch), jnp.float32),
        wls=glorot(k3, hid_ch, out_ch), bls=jnp.zeros((1, out_ch), jnp.float32),
        out_ch=out_ch,
    )


def prepare_kernel_params(params):
    """One-time prep: fuse mu/logstd heads, pad to a lane-dense width, cast
    MXU operands to bf16. Done once, NOT per forward call."""
    out_ch = params["out_ch"]
    heads = 2 * out_ch
    heads_pad = max(LANE, round_up(heads, LANE))
    wh = jnp.pad(jnp.concatenate([params["wmu"], params["wls"]], axis=1),
                 ((0, 0), (0, heads_pad - heads)))
    bh = jnp.pad(jnp.concatenate([params["bmu"], params["bls"]], axis=1),
                 ((0, 0), (0, heads_pad - heads)))
    return dict(
        w1=params["w1"].astype(jnp.bfloat16),
        b1=params["b1"],                      # biases stay f32 (VPU math)
        wh=wh.astype(jnp.bfloat16),
        bh=bh,
        out_ch=out_ch,
    )


# ----------------------------- references ---------------------------------- #
def reference_forward_f32(adj, x, p):
    h = jnp.maximum(adj @ (x @ p["w1"]) + p["b1"], 0.0)
    mu = adj @ (h @ p["wmu"]) + p["bmu"]
    ls = adj @ (h @ p["wls"]) + p["bls"]
    return mu, ls


def reference_forward_bf16(adj, x, p):
    """Same math with the kernel's bf16 MXU-operand casts / f32 accumulation."""
    bf = lambda a: a.astype(jnp.bfloat16)
    f32 = jnp.float32
    xw = jnp.dot(bf(x), bf(p["w1"]), preferred_element_type=f32)
    h = jnp.maximum(jnp.dot(bf(adj), bf(xw), preferred_element_type=f32)
                    + p["b1"], 0.0)
    ah = jnp.dot(bf(adj), bf(h), preferred_element_type=f32)
    mu = jnp.dot(bf(ah), bf(p["wmu"]), preferred_element_type=f32) + p["bmu"]
    ls = jnp.dot(bf(ah), bf(p["wls"]), preferred_element_type=f32) + p["bls"]
    return mu, ls


# --------------------------------- main ------------------------------------ #
if __name__ == "__main__":
    IN_CH, HID_CH, OUT_CH = 32, 32, 16

    key = jax.random.PRNGKey(0)
    k_params, k_data = jax.random.split(key)
    params = init_params(k_params, IN_CH, HID_CH, OUT_CH)
    prep = prepare_kernel_params(params)      # one-time head fusion / bf16 cast

    # case 0: toy shape (single grid step); case 1 exercises the tiled grid.
    for case_idx, (n_nodes, n_extra) in enumerate([(16, 8), (300, 900)]):
        k_x, k_e = jax.random.split(jax.random.fold_in(k_data, case_idx))

        x = jax.random.normal(k_x, (n_nodes, IN_CH), jnp.float32)

        # deterministic edge_index: ring + random chords (no self loops)
        ring_src = jnp.arange(n_nodes, dtype=jnp.int32)
        ring_dst = (ring_src + 1) % n_nodes
        extra_src = jax.random.randint(k_e, (n_extra,), 0, n_nodes, jnp.int32)
        extra_dst = (extra_src + 3) % n_nodes
        edge_index = jnp.stack([jnp.concatenate([ring_src, extra_src]),
                                jnp.concatenate([ring_dst, extra_dst])])

        n_pad = round_up(n_nodes, TILE)
        adj_f32, adj_b16 = build_norm_adj(edge_index, n_nodes, n_pad)
        x_pad = jnp.pad(x, ((0, n_pad - n_nodes), (0, 0))).astype(jnp.bfloat16)

        mu, logstd = encoder_forward(adj_b16, x_pad, prep, n_nodes)
        jax.block_until_ready((mu, logstd))

        adj_real = adj_f32[:n_nodes, :n_nodes]

        # tight check vs a reference using the same bf16 MXU-operand numerics
        mu_bf, ls_bf = reference_forward_bf16(adj_real, x, params)
        assert jnp.allclose(mu, mu_bf, atol=1e-3, rtol=1e-3)
        assert jnp.allclose(logstd, ls_bf, atol=1e-3, rtol=1e-3)

        # loose check vs pure-f32 module semantics (bf16 rounding budget)
        mu_f32, ls_f32 = reference_forward_f32(adj_real, x, params)
        assert jnp.allclose(mu, mu_f32, atol=1e-1, rtol=1e-1)
        assert jnp.allclose(logstd, ls_f32, atol=1e-1, rtol=1e-1)

        assert mu.shape == (n_nodes, OUT_CH) and logstd.shape == (n_nodes, OUT_CH)

    print("KERNEL_OK")
</pallas_src>

<mosaic_0001>
module attributes {stable_mosaic.version = 11 : i64} {
  func.func @gcn_layer1_kernel(%arg0: i32, %arg1: i32, %arg2: memref<128x128xbf16, #tpu.memory_space<vmem>>, %arg3: memref<128x32xbf16, #tpu.memory_space<vmem>>, %arg4: memref<32x32xbf16, #tpu.memory_space<vmem>>, %arg5: memref<1x32xf32, #tpu.memory_space<vmem>>, %arg6: memref<128x32xbf16, #tpu.memory_space<vmem>>, %arg7: memref<128x32xf32, #tpu.memory_space<vmem>>) attributes {dimension_semantics = [#tpu.dimension_semantics<parallel>, #tpu.dimension_semantics<arbitrary>], iteration_bounds = array<i64: 1, 1>, scalar_prefetch = 0 : i64, scratch_operands = 1 : i64, tpu.core_type = #tpu.core_type<tc>, window_params = [{transform_indices = @transform_0, window_bounds = array<i64: 128, 128>}, {transform_indices = @transform_1, window_bounds = array<i64: 128, 32>}, {pipeline_mode = #tpu.pipeline_mode<synchronous>, transform_indices = @transform_2, window_bounds = array<i64: 32, 32>}, {pipeline_mode = #tpu.pipeline_mode<synchronous>, transform_indices = @transform_3, window_bounds = array<i64: 1, 32>}, {transform_indices = @transform_4, window_bounds = array<i64: 128, 32>}]} {
    %c0_i32 = arith.constant 0 : i32
    %0 = arith.cmpi eq, %arg1, %c0_i32 : i32
    %1 = arith.extui %0 : i1 to i32
    %c0_i32_0 = arith.constant 0 : i32
    %2 = arith.cmpi ne, %1, %c0_i32_0 : i32
    scf.if %2 {
      %cst_13 = arith.constant 0.000000e+00 : f32
      %15 = vector.broadcast %cst_13 : f32 to vector<128x32xf32>
      %c0_14 = arith.constant 0 : index
      %c0_15 = arith.constant 0 : index
      %16 = vector.load %arg7[%c0_14, %c0_15] : memref<128x32xf32, #tpu.memory_space<vmem>>, vector<128x32xf32>
      tpu.vector_store %arg7[%c0_14, %c0_15], %15 {strides = array<i32>} : memref<128x32xf32, #tpu.memory_space<vmem>>, vector<128x32xf32>,
    } else {
    }
    %c0 = arith.constant 0 : index
    %c0_1 = arith.constant 0 : index
    %3 = vector.load %arg3[%c0, %c0_1] : memref<128x32xbf16, #tpu.memory_space<vmem>>, vector<128x32xbf16>
    %c0_2 = arith.constant 0 : index
    %c0_3 = arith.constant 0 : index
    %4 = vector.load %arg4[%c0_2, %c0_3] : memref<32x32xbf16, #tpu.memory_space<vmem>>, vector<32x32xbf16>
    %cst = arith.constant dense<0.000000e+00> : vector<128x32xf32>
    %5 = tpu.matmul %3, %4, %cst {dimension_numbers = #tpu.dot_dimension_numbers<[1], [0], [0], [1], [0, 0, 1, 1], [], []>} : vector<128x32xbf16>, vector<32x32xbf16>, vector<128x32xf32> -> vector<128x32xf32>
    %c0_4 = arith.constant 0 : index
    %c0_5 = arith.constant 0 : index
    %6 = vector.load %arg7[%c0_4, %c0_5] : memref<128x32xf32, #tpu.memory_space<vmem>>, vector<128x32xf32>
    %c0_6 = arith.constant 0 : index
    %c0_7 = arith.constant 0 : index
    %7 = vector.load %arg2[%c0_6, %c0_7] : memref<128x128xbf16, #tpu.memory_space<vmem>>, vector<128x128xbf16>
    %8 = arith.truncf %5 : vector<128x32xf32> to vector<128x32xbf16>
    %cst_8 = arith.constant dense<0.000000e+00> : vector<128x32xf32>
    %9 = tpu.matmul %7, %8, %cst_8 {dimension_numbers = #tpu.dot_dimension_numbers<[1], [0], [0], [1], [0, 0, 1, 1], [], []>} : vector<128x128xbf16>, vector<128x32xbf16>, vector<128x32xf32> -> vector<128x32xf32>
    %10 = arith.addf %6, %9 : vector<128x32xf32>
    %c0_9 = arith.constant 0 : index
    %c0_10 = arith.constant 0 : index
    %11 = vector.load %arg7[%c0_9, %c0_10] : memref<128x32xf32, #tpu.memory_space<vmem>>, vector<128x32xf32>
    tpu.vector_store %arg7[%c0_9, %c0_10], %10 {strides = array<i32>} : memref<128x32xf32, #tpu.memory_space<vmem>>, vector<128x32xf32>,
    %c0_i32_11 = arith.constant 0 : i32
    %12 = arith.cmpi eq, %arg1, %c0_i32_11 : i32
    %13 = arith.extui %12 : i1 to i32
    %c0_i32_12 = arith.constant 0 : i32
    %14 = arith.cmpi ne, %13, %c0_i32_12 : i32
    scf.if %14 {
      %c0_13 = arith.constant 0 : index
      %c0_14 = arith.constant 0 : index
      %15 = vector.load %arg7[%c0_13, %c0_14] : memref<128x32xf32, #tpu.memory_space<vmem>>, vector<128x32xf32>
      %c0_15 = arith.constant 0 : index
      %c0_16 = arith.constant 0 : index
      %16 = vector.load %arg5[%c0_15, %c0_16] : memref<1x32xf32, #tpu.memory_space<vmem>>, vector<1x32xf32>
      %17 = vector.broadcast %16 : vector<1x32xf32> to vector<128x32xf32>
      %18 = arith.addf %15, %17 : vector<128x32xf32>
      %cst_17 = arith.constant 0.000000e+00 : f32
      %19 = vector.broadcast %cst_17 : f32 to vector<128x32xf32>
      %20 = arith.maximumf %18, %19 : vector<128x32xf32>
      %21 = arith.truncf %20 : vector<128x32xf32> to vector<128x32xbf16>
      %c0_18 = arith.constant 0 : index
      %c0_19 = arith.constant 0 : index
      %22 = vector.load %arg6[%c0_18, %c0_19] : memref<128x32xbf16, #tpu.memory_space<vmem>>, vector<128x32xbf16>
      tpu.vector_store %arg6[%c0_18, %c0_19], %21 {strides = array<i32>} : memref<128x32xbf16, #tpu.memory_space<vmem>>, vector<128x32xbf16>,
    } else {
    }
    return
  }
  func.func @transform_0(%arg0: i32, %arg1: i32) -> (i32, i32) {
    %c0_i32 = arith.constant 0 : i32
    return %arg0, %arg1 : i32, i32
  }
  func.func @transform_1(%arg0: i32, %arg1: i32) -> (i32, i32) {
    %c0_i32 = arith.constant 0 : i32
    %c0_i32_0 = arith.constant 0 : i32
    return %arg1, %c0_i32 : i32, i32
  }
  func.func @transform_2(%arg0: i32, %arg1: i32) -> (i32, i32) {
    %c0_i32 = arith.constant 0 : i32
    %c0_i32_0 = arith.constant 0 : i32
    %c0_i32_1 = arith.constant 0 : i32
    return %c0_i32, %c0_i32_0 : i32, i32
  }
  func.func @transform_3(%arg0: i32, %arg1: i32) -> (i32, i32) {
    %c0_i32 = arith.constant 0 : i32
    %c0_i32_0 = arith.constant 0 : i32
    %c0_i32_1 = arith.constant 0 : i32
    return %c0_i32, %c0_i32_0 : i32, i32
  }
  func.func @transform_4(%arg0: i32, %arg1: i32) -> (i32, i32) {
    %c0_i32 = arith.constant 0 : i32
    %c0_i32_0 = arith.constant 0 : i32
    return %arg0, %c0_i32 : i32, i32
  }
}

</mosaic_0001>

<llo_original>
// kernel: tpu_custom_call.1
$region0: #{tpu_custom_call.1}
  #allocation0 [shape = 'u32[]', space=smem, size = 0x4, offset = 0x4, fixed_abs, tag = 'smem constant byte address 0x4 - core index']
  #allocation1 [shape = 'u32[72,128]{1,0:T(1,128)}', space=vmem, size = 0x9000, scoped, tag = 'internal scratch']
  #allocation2 [shape = 'f32[128,32]{1,0:T(8,128)}', space=vmem, size = 0x10000, scoped, tag = 'scratch operand']
  %s0 = inlined_call_operand.vmem [shape: bf16[128,128], index: 0, kind: input, shape index: {}]
  %s1 = inlined_call_operand.vmem [shape: bf16[128,32], index: 1, kind: input, shape index: {}]
  %s2 = inlined_call_operand.vmem [shape: bf16[32,32], index: 2, kind: input, shape index: {}]
  %s3 = inlined_call_operand.vmem [shape: f32[1,32], index: 3, kind: input, shape index: {}]
  %s4 = inlined_call_operand.vmem [shape: bf16[128,32], index: 4, kind: output, shape index: {}]
  %s5 = sld [smem:[#allocation0]]
  $region34: #{tpu_custom_call.1} parent=0
    _
  %s7 = ssub.s32 1, %s5
  %s8 = scalar_select 0, %s7, %s5
  // Predicated region
  $region2: #{tpu_custom_call.1} parent=0 // pred_check
    _
  $region3: #{tpu_custom_call.1} parent=0 // pred_check_branch
    %10 = sbr.rel (0) target = $region5
  $region4: #{tpu_custom_call.1} parent=0 // pred_region
    _
  $region5: #{tpu_custom_call.1} parent=0 // pred_fallthru
    _
  // Predicated region
  $region6: #{tpu_custom_call.1} parent=0 // pred_check
    _
  $region7: #{tpu_custom_call.1} parent=0 // pred_check_branch
    %12 = sbr.rel (0) target = $region9
  $region8: #{tpu_custom_call.1} parent=0 // pred_region
    _
  $region9: #{tpu_custom_call.1} parent=0 // pred_fallthru
    _
  // Predicated region
  $region10: #{tpu_custom_call.1} parent=0 // pred_check
    _
  $region11: #{tpu_custom_call.1} parent=0 // pred_check_branch
    %14 = sbr.rel (0) target = $region13
  $region12: #{tpu_custom_call.1} parent=0 // pred_region
    _
  $region13: #{tpu_custom_call.1} parent=0 // pred_fallthru
    _
  // Predicated region
  $region14: #{tpu_custom_call.1} parent=0 // pred_check
    _
  $region15: #{tpu_custom_call.1} parent=0 // pred_check_branch
    %16 = sbr.rel (0) target = $region17
  $region16: #{tpu_custom_call.1} parent=0 // pred_region
    _
  $region17: #{tpu_custom_call.1} parent=0 // pred_fallthru
    _
  %p18 = scmp.eq.s32.totalorder 0, 0
  // Predicated region
  $region18: #{tpu_custom_call.1} parent=0 // pred_check
    %p19 = pneg %p18
  $region19: #{tpu_custom_call.1} parent=0 // pred_check_branch
    %21 = sbr.rel (%p19) target = $region21
  $region20: #{tpu_custom_call.1} parent=0 // pred_region
    %vm22 = vcmask 261120
    %23 = vst.msk [vmem:[#allocation2] sm:$0xff] %vm22, 0.0
    %24 = vst.msk [vmem:[#allocation2 + $0x8] sm:$0xff] %vm22, 0.0
    %25 = vst.msk [vmem:[#allocation2 + $0x10] sm:$0xff] %vm22, 0.0
    %26 = vst.msk [vmem:[#allocation2 + $0x18] sm:$0xff] %vm22, 0.0
    %27 = vst.msk [vmem:[#allocation2 + $0x20] sm:$0xff] %vm22, 0.0
    %28 = vst.msk [vmem:[#allocation2 + $0x28] sm:$0xff] %vm22, 0.0
    %29 = vst.msk [vmem:[#allocation2 + $0x30] sm:$0xff] %vm22, 0.0
    %30 = vst.msk [vmem:[#allocation2 + $0x38] sm:$0xff] %vm22, 0.0
    %31 = vst.msk [vmem:[#allocation2 + $0x40] sm:$0xff] %vm22, 0.0
    %32 = vst.msk [vmem:[#allocation2 + $0x48] sm:$0xff] %vm22, 0.0
    %33 = vst.msk [vmem:[#allocation2 + $0x50] sm:$0xff] %vm22, 0.0
    %34 = vst.msk [vmem:[#allocation2 + $0x58] sm:$0xff] %vm22, 0.0
    %35 = vst.msk [vmem:[#allocation2 + $0x60] sm:$0xff] %vm22, 0.0
    %36 = vst.msk [vmem:[#allocation2 + $0x68] sm:$0xff] %vm22, 0.0
    %37 = vst.msk [vmem:[#allocation2 + $0x70] sm:$0xff] %vm22, 0.0
    %38 = vst.msk [vmem:[#allocation2 + $0x78] sm:$0xff] %vm22, 0.0
  $region21: #{tpu_custom_call.1} parent=0 // pred_fallthru
    _
  %v39 = vld [vmem:[%s1] sm:$0xf]
  %v40 = vld [vmem:[%s1 + $0x4] sm:$0xf]
  %v41 = vld [vmem:[%s1 + $0x8] sm:$0xf]
  %v42 = vld [vmem:[%s1 + $0xc] sm:$0xf]
  %v43 = vld [vmem:[%s1 + $0x10] sm:$0xf]
  %v44 = vld [vmem:[%s1 + $0x14] sm:$0xf]
  %v45 = vld [vmem:[%s1 + $0x18] sm:$0xf]
  %v46 = vld [vmem:[%s1 + $0x1c] sm:$0xf]
  %v47 = vld [vmem:[%s1 + $0x20] sm:$0xf]
  %v48 = vld [vmem:[%s1 + $0x24] sm:$0xf]
  %v49 = vld [vmem:[%s1 + $0x28] sm:$0xf]
  %v50 = vld [vmem:[%s1 + $0x2c] sm:$0xf]
  %v51 = vld [vmem:[%s1 + $0x30] sm:$0xf]
  %v52 = vld [vmem:[%s1 + $0x34] sm:$0xf]
  %v53 = vld [vmem:[%s1 + $0x38] sm:$0xf]
  %v54 = vld [vmem:[%s1 + $0x3c] sm:$0xf]
  %v55 = vld [vmem:[%s2] sm:$0xf]
  %v56 = vld [vmem:[%s2 + $0x4] sm:$0xf]
  %v57 = vld [vmem:[%s2 + $0x8] sm:$0xf]
  %v58 = vld [vmem:[%s2 + $0xc] sm:$0xf]
  %v75 = vunpack.c.l.b16 %v39
  %v76 = vunpack.c.l.b16 %v40
  %v77 = vunpack.c.l.b16 %v41
  %v78 = vunpack.c.l.b16 %v42
  %v79 = vunpack.c.l.b16 %v43
  %v80 = vunpack.c.l.b16 %v44
  %v81 = vunpack.c.l.b16 %v45
  %v82 = vunpack.c.l.b16 %v46
  %v83 = vunpack.c.l.b16 %v47
  %v84 = vunpack.c.l.b16 %v48
  %v85 = vunpack.c.l.b16 %v49
  %v86 = vunpack.c.l.b16 %v50
  %v87 = vunpack.c.l.b16 %v51
  %v88 = vunpack.c.l.b16 %v52
  %v89 = vunpack.c.l.b16 %v53
  %v90 = vunpack.c.l.b16 %v54
  %v91 = vpack.c.b16 %v76, %v75
  %v92 = vpack.c.b16 %v78, %v77
  %v93 = vpack.c.b16 %v80, %v79
  %v94 = vpack.c.b16 %v82, %v81
  %v95 = vpack.c.b16 %v84, %v83
  %v96 = vpack.c.b16 %v86, %v85
  %v97 = vpack.c.b16 %v88, %v87
  %v98 = vpack.c.b16 %v90, %v89
  %v103 = vunpack.c.l.b16 %v55
  %v104 = vunpack.c.l.b16 %v56
  %v105 = vunpack.c.l.b16 %v57
  %v106 = vunpack.c.l.b16 %v58
  %v107 = vpack.c.b16 %v104, %v103
  %v108 = vpack.c.b16 %v106, %v105
  %vm111 = vcmask 261120
  %v113 = vsel %vm111, %v91, 0
  %v116 = vsel %vm111, %v92, 0
  %v119 = vsel %vm111, %v93, 0
  %v122 = vsel %vm111, %v94, 0
  %v125 = vsel %vm111, %v95, 0
  %v128 = vsel %vm111, %v96, 0
  %v131 = vsel %vm111, %v97, 0
  %v134 = vsel %vm111, %v98, 0
  %136 = vmatpush.bf16.msra.mxu0 0
  %137 = vmatpush.bf16.msra.mxu0 0
  %138 = vmatpush.bf16.msra.mxu0 0
  %139 = vmatpush.bf16.msra.mxu0 0
  %140 = vmatpush.bf16.msra.mxu0 0
  %141 = vmatpush.bf16.msra.mxu0 0
  %142 = vmatpush.bf16.msra.mxu0 %v108
  %143 = vmatpush.bf16.msra.mxu0 %v107
  %144 = vmatmul.bf16.gmra.mxu0 %v113
  %v145 = vpop.f32.mrf.mxu0
  %v146 = vadd.f32 0.0, %v145
  %v147 = vpop.f32.mrf.mxu0
  %v148 = vadd.f32 0.0, %v147
  %149 = vmatmul.bf16.gmra.mxu0 %v116
  %v150 = vpop.f32.mrf.mxu0
  %v151 = vadd.f32 0.0, %v150
  %v152 = vpop.f32.mrf.mxu0
  %v153 = vadd.f32 0.0, %v152
  %154 = vmatmul.bf16.gmra.mxu0 %v119
  %v155 = vpop.f32.mrf.mxu0
  %v156 = vadd.f32 0.0, %v155
  %v157 = vpop.f32.mrf.mxu0
  %v158 = vadd.f32 0.0, %v157
  %159 = vmatmul.bf16.gmra.mxu0 %v122
  %v160 = vpop.f32.mrf.mxu0
  %v161 = vadd.f32 0.0, %v160
  %v162 = vpop.f32.mrf.mxu0
  %v163 = vadd.f32 0.0, %v162
  %164 = vmatmul.bf16.gmra.mxu0 %v125
  %v165 = vpop.f32.mrf.mxu0
  %v166 = vadd.f32 0.0, %v165
  %v167 = vpop.f32.mrf.mxu0
  %v168 = vadd.f32 0.0, %v167
  %169 = vmatmul.bf16.gmra.mxu0 %v128
  %v170 = vpop.f32.mrf.mxu0
  %v171 = vadd.f32 0.0, %v170
  %v172 = vpop.f32.mrf.mxu0
  %v173 = vadd.f32 0.0, %v172
  %174 = vmatmul.bf16.gmra.mxu0 %v131
  %v175 = vpop.f32.mrf.mxu0
  %v176 = vadd.f32 0.0, %v175
  %v177 = vpop.f32.mrf.mxu0
  %v178 = vadd.f32 0.0, %v177
  %179 = vmatmul.bf16.gmra.mxu0 %v134
  %v180 = vpop.f32.mrf.mxu0
  %v181 = vadd.f32 0.0, %v180
  %v182 = vpop.f32.mrf.mxu0
  %v183 = vadd.f32 0.0, %v182
  %184 = vdwg.mxu0
  %v185 = vld [vmem:[#allocation2] sm:$0xff]
  %v186 = vld [vmem:[#allocation2 + $0x8] sm:$0xff]
  %v187 = vld [vmem:[#allocation2 + $0x10] sm:$0xff]
  %v188 = vld [vmem:[#allocation2 + $0x18] sm:$0xff]
  %v189 = vld [vmem:[#allocation2 + $0x20] sm:$0xff]
  %v190 = vld [vmem:[#allocation2 + $0x28] sm:$0xff]
  %v191 = vld [vmem:[#allocation2 + $0x30] sm:$0xff]
  %v192 = vld [vmem:[#allocation2 + $0x38] sm:$0xff]
  %v193 = vld [vmem:[#allocation2 + $0x40] sm:$0xff]
  %v194 = vld [vmem:[#allocation2 + $0x48] sm:$0xff]
  %v195 = vld [vmem:[#allocation2 + $0x50] sm:$0xff]
  %v196 = vld [vmem:[#allocation2 + $0x58] sm:$0xff]
  %v197 = vld [vmem:[#allocation2 + $0x60] sm:$0xff]
  %v198 = vld [vmem:[#allocation2 + $0x68] sm:$0xff]
  %v199 = vld [vmem:[#allocation2 + $0x70] sm:$0xff]
  %v200 = vld [vmem:[#allocation2 + $0x78] sm:$0xff]
  %v201 = vld [vmem:[%s0] sm:$0xf]
  %v202 = vld [vmem:[%s0 + $0x4] sm:$0xf]
  %v203 = vld [vmem:[%s0 + $0x8] sm:$0xf]
  %v204 = vld [vmem:[%s0 + $0xc] sm:$0xf]
  %v205 = vld [vmem:[%s0 + $0x10] sm:$0xf]
  %v206 = vld [vmem:[%s0 + $0x14] sm:$0xf]
  %v207 = vld [vmem:[%s0 + $0x18] sm:$0xf]
  %v208 = vld [vmem:[%s0 + $0x1c] sm:$0xf]
  %v209 = vld [vmem:[%s0 + $0x20] sm:$0xf]
  %v210 = vld [vmem:[%s0 + $0x24] sm:$0xf]
  %v211 = vld [vmem:[%s0 + $0x28] sm:$0xf]
  %v212 = vld [vmem:[%s0 + $0x2c] sm:$0xf]
  %v213 = vld [vmem:[%s0 + $0x30] sm:$0xf]
  %v214 = vld [vmem:[%s0 + $0x34] sm:$0xf]
  %v215 = vld [vmem:[%s0 + $0x38] sm:$0xf]
  %v216 = vld [vmem:[%s0 + $0x3c] sm:$0xf]
  %v217 = vpack.c.bf16 %v148, %v146
  %v218 = vpack.c.bf16 %v153, %v151
  %v219 = vpack.c.bf16 %v158, %v156
  %v220 = vpack.c.bf16 %v163, %v161
  %v221 = vpack.c.bf16 %v168, %v166
  %v222 = vpack.c.bf16 %v173, %v171
  %v223 = vpack.c.bf16 %v178, %v176
  %v224 = vpack.c.bf16 %v183, %v181
  %v241 = vunpack.c.l.b16 %v201
  %v242 = vunpack.c.l.b16 %v202
  %v243 = vunpack.c.l.b16 %v203
  %v244 = vunpack.c.l.b16 %v204
  %v245 = vunpack.c.l.b16 %v205
  %v246 = vunpack.c.l.b16 %v206
  %v247 = vunpack.c.l.b16 %v207
  %v248 = vunpack.c.l.b16 %v208
  %v249 = vunpack.c.l.b16 %v209
  %v250 = vunpack.c.l.b16 %v210
  %v251 = vunpack.c.l.b16 %v211
  %v252 = vunpack.c.l.b16 %v212
  %v253 = vunpack.c.l.b16 %v213
  %v254 = vunpack.c.l.b16 %v214
  %v255 = vunpack.c.l.b16 %v215
  %v256 = vunpack.c.l.b16 %v216
  %v257 = vpack.c.b16 %v242, %v241
  %v258 = vpack.c.b16 %v244, %v243
  %v259 = vpack.c.b16 %v246, %v245
  %v260 = vpack.c.b16 %v248, %v247
  %v261 = vpack.c.b16 %v250, %v249
  %v262 = vpack.c.b16 %v252, %v251
  %v263 = vpack.c.b16 %v254, %v253
  %v264 = vpack.c.b16 %v256, %v255
  %273 = vmatpush.bf16.msra.mxu0 %v224
  %274 = vmatpush.bf16.msra.mxu0 %v223
  %275 = vmatpush.bf16.msra.mxu0 %v222
  %276 = vmatpush.bf16.msra.mxu0 %v221
  %277 = vmatpush.bf16.msra.mxu0 %v220
  %278 = vmatpush.bf16.msra.mxu0 %v219
  %279 = vmatpush.bf16.msra.mxu0 %v218
  %280 = vmatpush.bf16.msra.mxu0 %v217
  %281 = vmatmul.bf16.gmra.mxu0 %v257
  %v282 = vpop.f32.mrf.mxu0
  %v283 = vadd.f32 0.0, %v282
  %v284 = vpop.f32.mrf.mxu0
  %v285 = vadd.f32 0.0, %v284
  %286 = vmatmul.bf16.gmra.mxu0 %v258
  %v287 = vpop.f32.mrf.mxu0
  %v288 = vadd.f32 0.0, %v287
  %v289 = vpop.f32.mrf.mxu0
  %v290 = vadd.f32 0.0, %v289
  %291 = vmatmul.bf16.gmra.mxu0 %v259
  %v292 = vpop.f32.mrf.mxu0
  %v293 = vadd.f32 0.0, %v292
  %v294 = vpop.f32.mrf.mxu0
  %v295 = vadd.f32 0.0, %v294
  %296 = vmatmul.bf16.gmra.mxu0 %v260
  %v297 = vpop.f32.mrf.mxu0
  %v298 = vadd.f32 0.0, %v297
  %v299 = vpop.f32.mrf.mxu0
  %v300 = vadd.f32 0.0, %v299
  %301 = vmatmul.bf16.gmra.mxu0 %v261
  %v302 = vpop.f32.mrf.mxu0
  %v303 = vadd.f32 0.0, %v302
  %v304 = vpop.f32.mrf.mxu0
  %v305 = vadd.f32 0.0, %v304
  %306 = vmatmul.bf16.gmra.mxu0 %v262
  %v307 = vpop.f32.mrf.mxu0
  %v308 = vadd.f32 0.0, %v307
  %v309 = vpop.f32.mrf.mxu0
  %v310 = vadd.f32 0.0, %v309
  %311 = vmatmul.bf16.gmra.mxu0 %v263
  %v312 = vpop.f32.mrf.mxu0
  %v313 = vadd.f32 0.0, %v312
  %v314 = vpop.f32.mrf.mxu0
  %v315 = vadd.f32 0.0, %v314
  %316 = vmatmul.bf16.gmra.mxu0 %v264
  %v317 = vpop.f32.mrf.mxu0
  %v318 = vadd.f32 0.0, %v317
  %v319 = vpop.f32.mrf.mxu0
  %v320 = vadd.f32 0.0, %v319
  %321 = vdwg.mxu0
  %v322 = vadd.f32 %v185, %v283
  %v323 = vadd.f32 %v186, %v285
  %v324 = vadd.f32 %v187, %v288
  %v325 = vadd.f32 %v188, %v290
  %v326 = vadd.f32 %v189, %v293
  %v327 = vadd.f32 %v190, %v295
  %v328 = vadd.f32 %v191, %v298
  %v329 = vadd.f32 %v192, %v300
  %v330 = vadd.f32 %v193, %v303
  %v331 = vadd.f32 %v194, %v305
  %v332 = vadd.f32 %v195, %v308
  %v333 = vadd.f32 %v196, %v310
  %v334 = vadd.f32 %v197, %v313
  %v335 = vadd.f32 %v198, %v315
  %v336 = vadd.f32 %v199, %v318
  %v337 = vadd.f32 %v200, %v320
  %338 = vst.msk [vmem:[#allocation2] sm:$0xff] %vm111, %v322
  %339 = vst.msk [vmem:[#allocation2 + $0x8] sm:$0xff] %vm111, %v323
  %340 = vst.msk [vmem:[#allocation2 + $0x10] sm:$0xff] %vm111, %v324
  %341 = vst.msk [vmem:[#allocation2 + $0x18] sm:$0xff] %vm111, %v325
  %342 = vst.msk [vmem:[#allocation2 + $0x20] sm:$0xff] %vm111, %v326
  %343 = vst.msk [vmem:[#allocation2 + $0x28] sm:$0xff] %vm111, %v327
  %344 = vst.msk [vmem:[#allocation2 + $0x30] sm:$0xff] %vm111, %v328
  %345 = vst.msk [vmem:[#allocation2 + $0x38] sm:$0xff] %vm111, %v329
  %346 = vst.msk [vmem:[#allocation2 + $0x40] sm:$0xff] %vm111, %v330
  %347 = vst.msk [vmem:[#allocation2 + $0x48] sm:$0xff] %vm111, %v331
  %348 = vst.msk [vmem:[#allocation2 + $0x50] sm:$0xff] %vm111, %v332
  %349 = vst.msk [vmem:[#allocation2 + $0x58] sm:$0xff] %vm111, %v333
  %350 = vst.msk [vmem:[#allocation2 + $0x60] sm:$0xff] %vm111, %v334
  %351 = vst.msk [vmem:[#allocation2 + $0x68] sm:$0xff] %vm111, %v335
  %352 = vst.msk [vmem:[#allocation2 + $0x70] sm:$0xff] %vm111, %v336
  %353 = vst.msk [vmem:[#allocation2 + $0x78] sm:$0xff] %vm111, %v337
  // Predicated region
  $region22: #{tpu_custom_call.1} parent=0 // pred_check
    %p354 = pneg %p18
  $region23: #{tpu_custom_call.1} parent=0 // pred_check_branch
    %356 = sbr.rel (%p354) target = $region25
  $region24: #{tpu_custom_call.1} parent=0 // pred_region
    %v357 = vld [vmem:[#allocation2] sm:$0xff]
    %v358 = vld [vmem:[#allocation2 + $0x8] sm:$0xff]
    %v359 = vld [vmem:[#allocation2 + $0x10] sm:$0xff]
    %v360 = vld [vmem:[#allocation2 + $0x18] sm:$0xff]
    %v361 = vld [vmem:[#allocation2 + $0x20] sm:$0xff]
    %v362 = vld [vmem:[#allocation2 + $0x28] sm:$0xff]
    %v363 = vld [vmem:[#allocation2 + $0x30] sm:$0xff]
    %v364 = vld [vmem:[#allocation2 + $0x38] sm:$0xff]
    %v365 = vld [vmem:[#allocation2 + $0x40] sm:$0xff]
    %v366 = vld [vmem:[#allocation2 + $0x48] sm:$0xff]
    %v367 = vld [vmem:[#allocation2 + $0x50] sm:$0xff]
    %v368 = vld [vmem:[#allocation2 + $0x58] sm:$0xff]
    %v369 = vld [vmem:[#allocation2 + $0x60] sm:$0xff]
    %v370 = vld [vmem:[#allocation2 + $0x68] sm:$0xff]
    %v371 = vld [vmem:[#allocation2 + $0x70] sm:$0xff]
    %v372 = vld [vmem:[#allocation2 + $0x78] sm:$0xff]
    %v373 = vld [vmem:[%s3] sm:$0x1]
    %v375 = vperm.slane %v373, 0
    %v377 = vadd.f32 %v357, %v375
    %v378 = vadd.f32 %v358, %v375
    %v379 = vadd.f32 %v359, %v375
    %v380 = vadd.f32 %v360, %v375
    %v381 = vadd.f32 %v361, %v375
    %v382 = vadd.f32 %v362, %v375
    %v383 = vadd.f32 %v363, %v375
    %v384 = vadd.f32 %v364, %v375
    %v385 = vadd.f32 %v365, %v375
    %v386 = vadd.f32 %v366, %v375
    %v387 = vadd.f32 %v367, %v375
    %v388 = vadd.f32 %v368, %v375
    %v389 = vadd.f32 %v369, %v375
    %v390 = vadd.f32 %v370, %v375
    %v391 = vadd.f32 %v371, %v375
    %v392 = vadd.f32 %v372, %v375
    %v393 = vmax.f32 %v377, 0.0
    %v394 = vmax.f32 %v378, 0.0
    %v395 = vmax.f32 %v379, 0.0
    %v396 = vmax.f32 %v380, 0.0
    %v397 = vmax.f32 %v381, 0.0
    %v398 = vmax.f32 %v382, 0.0
    %v399 = vmax.f32 %v383, 0.0
    %v400 = vmax.f32 %v384, 0.0
    %v401 = vmax.f32 %v385, 0.0
    %v402 = vmax.f32 %v386, 0.0
    %v403 = vmax.f32 %v387, 0.0
    %v404 = vmax.f32 %v388, 0.0
    %v405 = vmax.f32 %v389, 0.0
    %v406 = vmax.f32 %v390, 0.0
    %v407 = vmax.f32 %v391, 0.0
    %v408 = vmax.f32 %v392, 0.0
    %v409 = vpack.c.bf16 %v393, %v393
    %v410 = vpack.c.bf16 %v394, %v394
    %v411 = vpack.c.bf16 %v395, %v395
    %v412 = vpack.c.bf16 %v396, %v396
    %v413 = vpack.c.bf16 %v397, %v397
    %v414 = vpack.c.bf16 %v398, %v398
    %v415 = vpack.c.bf16 %v399, %v399
    %v416 = vpack.c.bf16 %v400, %v400
    %v417 = vpack.c.bf16 %v401, %v401
    %v418 = vpack.c.bf16 %v402, %v402
    %v419 = vpack.c.bf16 %v403, %v403
    %v420 = vpack.c.bf16 %v404, %v404
    %v421 = vpack.c.bf16 %v405, %v405
    %v422 = vpack.c.bf16 %v406, %v406
    %v423 = vpack.c.bf16 %v407, %v407
    %v424 = vpack.c.bf16 %v408, %v408
    %vm425 = vcmask 257024
    %426 = vst.msk [vmem:[%s4] sm:$0xf] %vm425, %v409
    %427 = vst.msk [vmem:[%s4 + $0x4] sm:$0xf] %vm425, %v410
    %428 = vst.msk [vmem:[%s4 + $0x8] sm:$0xf] %vm425, %v411
    %429 = vst.msk [vmem:[%s4 + $0xc] sm:$0xf] %vm425, %v412
    %430 = vst.msk [vmem:[%s4 + $0x10] sm:$0xf] %vm425, %v413
    %431 = vst.msk [vmem:[%s4 + $0x14] sm:$0xf] %vm425, %v414
    %432 = vst.msk [vmem:[%s4 + $0x18] sm:$0xf] %vm425, %v415
    %433 = vst.msk [vmem:[%s4 + $0x1c] sm:$0xf] %vm425, %v416
    %434 = vst.msk [vmem:[%s4 + $0x20] sm:$0xf] %vm425, %v417
    %435 = vst.msk [vmem:[%s4 + $0x24] sm:$0xf] %vm425, %v418
    %436 = vst.msk [vmem:[%s4 + $0x28] sm:$0xf] %vm425, %v419
    %437 = vst.msk [vmem:[%s4 + $0x2c] sm:$0xf] %vm425, %v420
    %438 = vst.msk [vmem:[%s4 + $0x30] sm:$0xf] %vm425, %v421
    %439 = vst.msk [vmem:[%s4 + $0x34] sm:$0xf] %vm425, %v422
    %440 = vst.msk [vmem:[%s4 + $0x38] sm:$0xf] %vm425, %v423
    %441 = vst.msk [vmem:[%s4 + $0x3c] sm:$0xf] %vm425, %v424
  $region25: #{tpu_custom_call.1} parent=0 // pred_fallthru
    _
  // Predicated region
  $region26: #{tpu_custom_call.1} parent=0 // pred_check
    _
  $region27: #{tpu_custom_call.1} parent=0 // pred_check_branch
    %443 = sbr.rel (0) target = $region29
  $region28: #{tpu_custom_call.1} parent=0 // pred_region
    _
  $region29: #{tpu_custom_call.1} parent=0 // pred_fallthru
    _
  // Predicated region
  $region30: #{tpu_custom_call.1} parent=0 // pred_check
    _
  $region31: #{tpu_custom_call.1} parent=0 // pred_check_branch
    %445 = sbr.rel (0) target = $region33
  $region32: #{tpu_custom_call.1} parent=0 // pred_region
    _
  $region33: #{tpu_custom_call.1} parent=0 // pred_fallthru
    _

</llo_original>
